<compile_context>
chip_gen: v6e
topology: v6e:2x2x1
jax: 0.10.0
libtpu: 0.0.40
codegen_flags: <defaults>
</compile_context>

<pallas_src>
import functools

import jax
import jax.numpy as jnp
from jax.experimental import pallas as pl
from jax.experimental.pallas import tpu as pltpu


def _attention_pool_kernel(num_heads, mxu_dtype,
                           x_ref, posm_ref, poss_ref,
                           wq_ref, bq_ref,
                           wkv_ref, bkv_ref,
                           wc_ref, bc_ref,
                           eh_ref, he_ref,
                           out_ref):
    f32 = jnp.float32
    B, HW, C = x_ref.shape

    x = x_ref[...].astype(f32)                                   # (B, HW, C)

    # pooled token = spatial mean (pre-pos) + pos[0]; spatial tokens + pos[1:]
    mean_tok = jnp.mean(x, axis=1) + posm_ref[...].astype(f32)   # (B, C)
    xs = x + poss_ref[...].astype(f32)[None]                     # (B, HW, C)

    # q projection of the pooled query token (scale pre-folded into wq/bq)
    q = jnp.dot(mean_tok.astype(mxu_dtype), wq_ref[...],
                preferred_element_type=f32) + bq_ref[...].astype(f32)       # (B, C)

    # fused K/V projection: one big aligned (B*HW, C) @ (C, 2C) matmul, plus a
    # small (B, C) @ (C, 2C) matmul for the pooled key/value token.
    kv_sp = jnp.dot(xs.reshape(B * HW, C).astype(mxu_dtype), wkv_ref[...],
                    preferred_element_type=f32) + bkv_ref[...].astype(f32)  # (B*HW, 2C)
    kv_m = jnp.dot(mean_tok.astype(mxu_dtype), wkv_ref[...],
                   preferred_element_type=f32) + bkv_ref[...].astype(f32)   # (B, 2C)

    k_sp = kv_sp[:, :C].reshape(B, HW, C)
    v_sp = kv_sp[:, C:].reshape(B, HW, C)
    k_m = kv_m[:, :C]                                            # (B, C)
    v_m = kv_m[:, C:]                                            # (B, C)

    # Per-head scores with no per-head slicing: elementwise q*k, then a
    # segmented lane-reduction expressed as a matmul with the one-hot head map.
    eh = eh_ref[...]                                             # (C, heads) f32
    he = he_ref[...]                                             # (heads, C) f32
    s_sp = jnp.dot((k_sp * q[:, None, :]).reshape(B * HW, C), eh,
                   preferred_element_type=f32).reshape(B, HW, num_heads)
    s_m = jnp.dot(k_m * q, eh, preferred_element_type=f32)       # (B, heads)

    # softmax over the 1 + HW keys; pooled key handled out-of-band so the big
    # block stays sublane-aligned (no row-shifting concat).
    m = jnp.maximum(jnp.max(s_sp, axis=1), s_m)                  # (B, heads)
    p_sp = jnp.exp(s_sp - m[:, None, :])                         # (B, HW, heads)
    p_m = jnp.exp(s_m - m)                                       # (B, heads)
    denom = jnp.sum(p_sp, axis=1) + p_m                          # (B, heads)

    # broadcast per-head weights across that head's lanes (p @ E^T), weight V
    pw_sp = jnp.dot(p_sp.reshape(B * HW, num_heads), he,
                    preferred_element_type=f32).reshape(B, HW, C)
    pw_m = jnp.dot(p_m, he, preferred_element_type=f32)          # (B, C)
    o = jnp.sum(pw_sp * v_sp, axis=1) + pw_m * v_m               # (B, C)
    inv = pl.reciprocal(jnp.dot(denom, he, preferred_element_type=f32),
                        approx=True)                             # (B, C)
    o = o * inv

    # output projection
    y = jnp.dot(o.astype(mxu_dtype), wc_ref[...],
                preferred_element_type=f32) + bc_ref[...].astype(f32)       # (B, out_dim)
    out_ref[...] = y.astype(out_ref.dtype)


def _pick_batch_block(n, block_b):
    # Output block is (bb, out_dim): second-to-last dim must be a multiple of 8
    # or equal the full batch dim.
    if n <= block_b:
        return n
    return max(8, (block_b // 8) * 8)


def attention_pool2d(x, pos, wq, bq, wk, bk, wv, bv, wc, bc, num_heads, *,
                     block_b=8, mxu_dtype=jnp.bfloat16, out_dtype=jnp.float32):
    N, C, H, W = x.shape
    HW = H * W
    out_dim = wc.shape[0]
    head_dim = C // num_heads
    scale = float(head_dim) ** -0.5

    bb = _pick_batch_block(N, block_b)
    grid_n = pl.cdiv(N, bb)

    # ---------------- plain-JAX glue (one-time, outside the kernel) ---------
    # NCHW -> (N, HW, C) tokens, kept in their native dtype (no f32 upcast).
    tokens = jnp.transpose(x.reshape(N, C, HW), (0, 2, 1))
    # positional embedding split: pooled row / spatial rows
    posm = pos[0:1]                                              # (1, C)
    poss = pos[1:]                                               # (HW, C)
    # pre-transposed (C_in, C_out) weights; q scale folded; k/v fused; bf16 MXU
    wq_t = (wq.T * scale).astype(mxu_dtype)                      # (C, C)
    bq2 = (bq * scale).reshape(1, C).astype(jnp.float32)
    wkv_t = jnp.concatenate([wk.T, wv.T], axis=1).astype(mxu_dtype)   # (C, 2C)
    bkv2 = jnp.concatenate([bk, bv]).reshape(1, 2 * C).astype(jnp.float32)
    wc_t = wc.T.astype(mxu_dtype)                                # (C, out_dim)
    bc2 = bc.reshape(1, out_dim).astype(jnp.float32)
    # one-hot head-membership matrix for segmented per-head reductions
    head_ids = jnp.arange(C, dtype=jnp.int32) // head_dim
    eh = (head_ids[:, None] == jnp.arange(num_heads, dtype=jnp.int32)[None, :]
          ).astype(jnp.float32)                                  # (C, heads)
    he = eh.T                                                    # (heads, C)

    kernel = functools.partial(_attention_pool_kernel, num_heads, mxu_dtype)

    def const_spec(a):
        nd = a.ndim
        return pl.BlockSpec(a.shape, lambda n, _nd=nd: (0,) * _nd)

    out = pl.pallas_call(
        kernel,
        out_shape=jax.ShapeDtypeStruct((N, out_dim), out_dtype),
        grid_spec=pltpu.PrefetchScalarGridSpec(
            num_scalar_prefetch=0,
            grid=(grid_n,),
            in_specs=[
                pl.BlockSpec((bb, HW, C), lambda n: (n, 0, 0)),
                const_spec(posm), const_spec(poss),
                const_spec(wq_t), const_spec(bq2),
                const_spec(wkv_t), const_spec(bkv2),
                const_spec(wc_t), const_spec(bc2),
                const_spec(eh), const_spec(he),
            ],
            out_specs=pl.BlockSpec((bb, out_dim), lambda n: (n, 0)),
        ),
        compiler_params=pltpu.CompilerParams(
            dimension_semantics=("parallel",),
            vmem_limit_bytes=48 * 1024 * 1024,
        ),
    )(tokens, posm, poss, wq_t, bq2, wkv_t, bkv2, wc_t, bc2, eh, he)
    return out


def _reference(x, pos, wq, bq, wk, bk, wv, bv, wc, bc, num_heads):
    # pure-JAX reference mirroring torch.nn.functional.multi_head_attention_forward
    N, C, H, W = x.shape
    HW = H * W
    hd = C // num_heads
    t = jnp.transpose(x.reshape(N, C, HW), (2, 0, 1))            # (HW, N, C)
    t = jnp.concatenate([t.mean(axis=0, keepdims=True), t], 0)   # (S1, N, C)
    t = t + pos[:, None, :]
    S1 = HW + 1
    q = jnp.einsum('snc,oc->sno', t, wq) + bq
    k = jnp.einsum('snc,oc->sno', t, wk) + bk
    v = jnp.einsum('snc,oc->sno', t, wv) + bv
    q = q * (hd ** -0.5)
    qh = q.reshape(S1, N, num_heads, hd)
    kh = k.reshape(S1, N, num_heads, hd)
    vh = v.reshape(S1, N, num_heads, hd)
    scores = jnp.einsum('qnhd,knhd->nhqk', qh, kh)
    p = jax.nn.softmax(scores, axis=-1)
    o = jnp.einsum('nhqk,knhd->qnhd', p, vh).reshape(S1, N, C)
    out = jnp.einsum('snc,oc->sno', o, wc) + bc
    return out[0]                                                 # (N, out_dim)


if __name__ == "__main__":
    # small shapes consistent with the module
    N, C, H, W = 2, 32, 4, 4          # batch, embed_dim (channels), spatial
    num_heads = 4
    out_dim = 64
    spacial_dim = H                   # H == W
    S1 = spacial_dim * spacial_dim + 1

    key = jax.random.PRNGKey(0)
    keys = jax.random.split(key, 10)

    x = jax.random.normal(keys[0], (N, C, H, W), dtype=jnp.float32)
    pos = jax.random.normal(keys[1], (S1, C), dtype=jnp.float32) / (C ** 0.5)
    wq = jax.random.normal(keys[2], (C, C), dtype=jnp.float32) * 0.05
    bq = jax.random.normal(keys[3], (C,), dtype=jnp.float32) * 0.05
    wk = jax.random.normal(keys[4], (C, C), dtype=jnp.float32) * 0.05
    bk = jax.random.normal(keys[5], (C,), dtype=jnp.float32) * 0.05
    wv = jax.random.normal(keys[6], (C, C), dtype=jnp.float32) * 0.05
    bv = jax.random.normal(keys[7], (C,), dtype=jnp.float32) * 0.05
    wc = jax.random.normal(keys[8], (out_dim, C), dtype=jnp.float32) * 0.05
    bc = jax.random.normal(keys[9], (out_dim,), dtype=jnp.float32) * 0.05

    out = attention_pool2d(x, pos, wq, bq, wk, bk, wv, bv, wc, bc, num_heads)
    out = jax.block_until_ready(out)

    ref = _reference(x, pos, wq, bq, wk, bk, wv, bv, wc, bc, num_heads)
    assert out.shape == (N, out_dim), out.shape
    assert jnp.allclose(out, ref, rtol=1e-2, atol=1e-2), (
        float(jnp.max(jnp.abs(out - ref))))

    print("KERNEL_OK")
</pallas_src>

<mosaic_0001>
module attributes {stable_mosaic.version = 11 : i64} {
  func.func @_attention_pool_kernel(%arg0: i32, %arg1: memref<2x16x32xf32, #tpu.memory_space<vmem>>, %arg2: memref<1x32xf32, #tpu.memory_space<vmem>>, %arg3: memref<16x32xf32, #tpu.memory_space<vmem>>, %arg4: memref<32x32xbf16, #tpu.memory_space<vmem>>, %arg5: memref<1x32xf32, #tpu.memory_space<vmem>>, %arg6: memref<32x64xbf16, #tpu.memory_space<vmem>>, %arg7: memref<1x64xf32, #tpu.memory_space<vmem>>, %arg8: memref<32x64xbf16, #tpu.memory_space<vmem>>, %arg9: memref<1x64xf32, #tpu.memory_space<vmem>>, %arg10: memref<32x4xf32, #tpu.memory_space<vmem>>, %arg11: memref<4x32xf32, #tpu.memory_space<vmem>>, %arg12: memref<2x64xf32, #tpu.memory_space<vmem>>) attributes {dimension_semantics = [#tpu.dimension_semantics<parallel>], iteration_bounds = array<i64: 1>, scalar_prefetch = 0 : i64, scratch_operands = 0 : i64, tpu.core_type = #tpu.core_type<tc>, window_params = [{transform_indices = @transform_0, window_bounds = array<i64: 2, 16, 32>}, {pipeline_mode = #tpu.pipeline_mode<synchronous>, transform_indices = @transform_1, window_bounds = array<i64: 1, 32>}, {pipeline_mode = #tpu.pipeline_mode<synchronous>, transform_indices = @transform_2, window_bounds = array<i64: 16, 32>}, {pipeline_mode = #tpu.pipeline_mode<synchronous>, transform_indices = @transform_3, window_bounds = array<i64: 32, 32>}, {pipeline_mode = #tpu.pipeline_mode<synchronous>, transform_indices = @transform_4, window_bounds = array<i64: 1, 32>}, {pipeline_mode = #tpu.pipeline_mode<synchronous>, transform_indices = @transform_5, window_bounds = array<i64: 32, 64>}, {pipeline_mode = #tpu.pipeline_mode<synchronous>, transform_indices = @transform_6, window_bounds = array<i64: 1, 64>}, {pipeline_mode = #tpu.pipeline_mode<synchronous>, transform_indices = @transform_7, window_bounds = array<i64: 32, 64>}, {pipeline_mode = #tpu.pipeline_mode<synchronous>, transform_indices = @transform_8, window_bounds = array<i64: 1, 64>}, {pipeline_mode = #tpu.pipeline_mode<synchronous>, transform_indices = @transform_9, window_bounds = array<i64: 32, 4>}, {pipeline_mode = #tpu.pipeline_mode<synchronous>, transform_indices = @transform_10, window_bounds = array<i64: 4, 32>}, {transform_indices = @transform_11, window_bounds = array<i64: 2, 64>}]} {
    %c0 = arith.constant 0 : index
    %c0_0 = arith.constant 0 : index
    %c0_1 = arith.constant 0 : index
    %0 = vector.load %arg1[%c0, %c0_0, %c0_1] : memref<2x16x32xf32, #tpu.memory_space<vmem>>, vector<2x16x32xf32>
    %cst = arith.constant dense<0.000000e+00> : vector<2x32xf32>
    %1 = vector.multi_reduction <add>, %0, %cst [1] : vector<2x16x32xf32> to vector<2x32xf32>
    %cst_2 = arith.constant 1.600000e+01 : f32
    %2 = vector.broadcast %cst_2 : f32 to vector<2x32xf32>
    %3 = arith.divf %1, %2 : vector<2x32xf32>
    %c0_3 = arith.constant 0 : index
    %c0_4 = arith.constant 0 : index
    %4 = vector.load %arg2[%c0_3, %c0_4] : memref<1x32xf32, #tpu.memory_space<vmem>>, vector<1x32xf32>
    %5 = vector.broadcast %4 : vector<1x32xf32> to vector<2x32xf32>
    %6 = arith.addf %3, %5 : vector<2x32xf32>
    %c0_5 = arith.constant 0 : index
    %c0_6 = arith.constant 0 : index
    %7 = vector.load %arg3[%c0_5, %c0_6] : memref<16x32xf32, #tpu.memory_space<vmem>>, vector<16x32xf32>
    %8 = vector.shape_cast %7 : vector<16x32xf32> to vector<1x16x32xf32>
    %9 = vector.broadcast %8 : vector<1x16x32xf32> to vector<2x16x32xf32>
    %10 = arith.addf %0, %9 : vector<2x16x32xf32>
    %11 = arith.truncf %6 : vector<2x32xf32> to vector<2x32xbf16>
    %c0_7 = arith.constant 0 : index
    %c0_8 = arith.constant 0 : index
    %12 = vector.load %arg4[%c0_7, %c0_8] : memref<32x32xbf16, #tpu.memory_space<vmem>>, vector<32x32xbf16>
    %cst_9 = arith.constant dense<0.000000e+00> : vector<2x32xf32>
    %13 = tpu.matmul %11, %12, %cst_9 {dimension_numbers = #tpu.dot_dimension_numbers<[1], [0], [0], [1], [0, 0, 1, 1], [], []>} : vector<2x32xbf16>, vector<32x32xbf16>, vector<2x32xf32> -> vector<2x32xf32>
    %c0_10 = arith.constant 0 : index
    %c0_11 = arith.constant 0 : index
    %14 = vector.load %arg5[%c0_10, %c0_11] : memref<1x32xf32, #tpu.memory_space<vmem>>, vector<1x32xf32>
    %15 = vector.broadcast %14 : vector<1x32xf32> to vector<2x32xf32>
    %16 = arith.addf %13, %15 : vector<2x32xf32>
    %17 = vector.shape_cast %10 : vector<2x16x32xf32> to vector<32x32xf32>
    %18 = arith.truncf %17 : vector<32x32xf32> to vector<32x32xbf16>
    %c0_12 = arith.constant 0 : index
    %c0_13 = arith.constant 0 : index
    %19 = vector.load %arg6[%c0_12, %c0_13] : memref<32x64xbf16, #tpu.memory_space<vmem>>, vector<32x64xbf16>
    %cst_14 = arith.constant dense<0.000000e+00> : vector<32x64xf32>
    %20 = tpu.matmul %18, %19, %cst_14 {dimension_numbers = #tpu.dot_dimension_numbers<[1], [0], [0], [1], [0, 0, 1, 1], [], []>} : vector<32x32xbf16>, vector<32x64xbf16>, vector<32x64xf32> -> vector<32x64xf32>
    %c0_15 = arith.constant 0 : index
    %c0_16 = arith.constant 0 : index
    %21 = vector.load %arg7[%c0_15, %c0_16] : memref<1x64xf32, #tpu.memory_space<vmem>>, vector<1x64xf32>
    %22 = vector.broadcast %21 : vector<1x64xf32> to vector<32x64xf32>
    %23 = arith.addf %20, %22 : vector<32x64xf32>
    %24 = arith.truncf %6 : vector<2x32xf32> to vector<2x32xbf16>
    %c0_17 = arith.constant 0 : index
    %c0_18 = arith.constant 0 : index
    %25 = vector.load %arg6[%c0_17, %c0_18] : memref<32x64xbf16, #tpu.memory_space<vmem>>, vector<32x64xbf16>
    %cst_19 = arith.constant dense<0.000000e+00> : vector<2x64xf32>
    %26 = tpu.matmul %24, %25, %cst_19 {dimension_numbers = #tpu.dot_dimension_numbers<[1], [0], [0], [1], [0, 0, 1, 1], [], []>} : vector<2x32xbf16>, vector<32x64xbf16>, vector<2x64xf32> -> vector<2x64xf32>
    %c0_20 = arith.constant 0 : index
    %c0_21 = arith.constant 0 : index
    %27 = vector.load %arg7[%c0_20, %c0_21] : memref<1x64xf32, #tpu.memory_space<vmem>>, vector<1x64xf32>
    %28 = vector.broadcast %27 : vector<1x64xf32> to vector<2x64xf32>
    %29 = arith.addf %26, %28 : vector<2x64xf32>
    %30 = vector.extract_strided_slice %23 {offsets = [0, 0], sizes = [32, 32], strides = [1, 1]} : vector<32x64xf32> to vector<32x32xf32>
    %31 = vector.shape_cast %30 : vector<32x32xf32> to vector<2x16x32xf32>
    %32 = vector.extract_strided_slice %23 {offsets = [0, 32], sizes = [32, 32], strides = [1, 1]} : vector<32x64xf32> to vector<32x32xf32>
    %33 = vector.shape_cast %32 : vector<32x32xf32> to vector<2x16x32xf32>
    %34 = vector.extract_strided_slice %29 {offsets = [0, 0], sizes = [2, 32], strides = [1, 1]} : vector<2x64xf32> to vector<2x32xf32>
    %35 = vector.extract_strided_slice %29 {offsets = [0, 32], sizes = [2, 32], strides = [1, 1]} : vector<2x64xf32> to vector<2x32xf32>
    %c0_22 = arith.constant 0 : index
    %c0_23 = arith.constant 0 : index
    %36 = vector.load %arg10[%c0_22, %c0_23] : memref<32x4xf32, #tpu.memory_space<vmem>>, vector<32x4xf32>
    %c0_24 = arith.constant 0 : index
    %c0_25 = arith.constant 0 : index
    %37 = vector.load %arg11[%c0_24, %c0_25] : memref<4x32xf32, #tpu.memory_space<vmem>>, vector<4x32xf32>
    %38 = vector.shape_cast %16 : vector<2x32xf32> to vector<2x1x32xf32>
    %39 = vector.broadcast %38 : vector<2x1x32xf32> to vector<2x16x32xf32>
    %40 = arith.mulf %31, %39 : vector<2x16x32xf32>
    %41 = vector.shape_cast %40 : vector<2x16x32xf32> to vector<32x32xf32>
    %cst_26 = arith.constant dense<0.000000e+00> : vector<32x4xf32>
    %42 = tpu.matmul %41, %36, %cst_26 {dimension_numbers = #tpu.dot_dimension_numbers<[1], [0], [0], [1], [0, 0, 1, 1], [], []>} : vector<32x32xf32>, vector<32x4xf32>, vector<32x4xf32> -> vector<32x4xf32>
    %43 = vector.shape_cast %42 : vector<32x4xf32> to vector<2x16x4xf32>
    %44 = arith.mulf %34, %16 : vector<2x32xf32>
    %cst_27 = arith.constant dense<0.000000e+00> : vector<2x4xf32>
    %45 = tpu.matmul %44, %36, %cst_27 {dimension_numbers = #tpu.dot_dimension_numbers<[1], [0], [0], [1], [0, 0, 1, 1], [], []>} : vector<2x32xf32>, vector<32x4xf32>, vector<2x4xf32> -> vector<2x4xf32>
    %cst_28 = arith.constant dense<0xFF800000> : vector<2x4xf32>
    %46 = vector.multi_reduction <maximumf>, %43, %cst_28 [1] : vector<2x16x4xf32> to vector<2x4xf32>
    %47 = arith.maximumf %46, %45 : vector<2x4xf32>
    %48 = vector.shape_cast %47 : vector<2x4xf32> to vector<2x1x4xf32>
    %49 = vector.broadcast %48 : vector<2x1x4xf32> to vector<2x16x4xf32>
    %50 = arith.subf %43, %49 : vector<2x16x4xf32>
    %51 = math.exp %50 : vector<2x16x4xf32>
    %52 = arith.subf %45, %47 : vector<2x4xf32>
    %53 = math.exp %52 : vector<2x4xf32>
    %cst_29 = arith.constant dense<0.000000e+00> : vector<2x4xf32>
    %54 = vector.multi_reduction <add>, %51, %cst_29 [1] : vector<2x16x4xf32> to vector<2x4xf32>
    %55 = arith.addf %54, %53 : vector<2x4xf32>
    %56 = vector.shape_cast %51 : vector<2x16x4xf32> to vector<32x4xf32>
    %cst_30 = arith.constant dense<0.000000e+00> : vector<32x32xf32>
    %57 = tpu.matmul %56, %37, %cst_30 {dimension_numbers = #tpu.dot_dimension_numbers<[1], [0], [0], [1], [0, 0, 1, 1], [], []>} : vector<32x4xf32>, vector<4x32xf32>, vector<32x32xf32> -> vector<32x32xf32>
    %58 = vector.shape_cast %57 : vector<32x32xf32> to vector<2x16x32xf32>
    %cst_31 = arith.constant dense<0.000000e+00> : vector<2x32xf32>
    %59 = tpu.matmul %53, %37, %cst_31 {dimension_numbers = #tpu.dot_dimension_numbers<[1], [0], [0], [1], [0, 0, 1, 1], [], []>} : vector<2x4xf32>, vector<4x32xf32>, vector<2x32xf32> -> vector<2x32xf32>
    %60 = arith.mulf %58, %33 : vector<2x16x32xf32>
    %cst_32 = arith.constant dense<0.000000e+00> : vector<2x32xf32>
    %61 = vector.multi_reduction <add>, %60, %cst_32 [1] : vector<2x16x32xf32> to vector<2x32xf32>
    %62 = arith.mulf %59, %35 : vector<2x32xf32>
    %63 = arith.addf %61, %62 : vector<2x32xf32>
    %cst_33 = arith.constant dense<0.000000e+00> : vector<2x32xf32>
    %64 = tpu.matmul %55, %37, %cst_33 {dimension_numbers = #tpu.dot_dimension_numbers<[1], [0], [0], [1], [0, 0, 1, 1], [], []>} : vector<2x4xf32>, vector<4x32xf32>, vector<2x32xf32> -> vector<2x32xf32>
    %65 = tpu.reciprocal %64 {approx = true} : vector<2x32xf32> -> vector<2x32xf32>
    %66 = arith.mulf %63, %65 : vector<2x32xf32>
    %67 = arith.truncf %66 : vector<2x32xf32> to vector<2x32xbf16>
    %c0_34 = arith.constant 0 : index
    %c0_35 = arith.constant 0 : index
    %68 = vector.load %arg8[%c0_34, %c0_35] : memref<32x64xbf16, #tpu.memory_space<vmem>>, vector<32x64xbf16>
    %cst_36 = arith.constant dense<0.000000e+00> : vector<2x64xf32>
    %69 = tpu.matmul %67, %68, %cst_36 {dimension_numbers = #tpu.dot_dimension_numbers<[1], [0], [0], [1], [0, 0, 1, 1], [], []>} : vector<2x32xbf16>, vector<32x64xbf16>, vector<2x64xf32> -> vector<2x64xf32>
    %c0_37 = arith.constant 0 : index
    %c0_38 = arith.constant 0 : index
    %70 = vector.load %arg9[%c0_37, %c0_38] : memref<1x64xf32, #tpu.memory_space<vmem>>, vector<1x64xf32>
    %71 = vector.broadcast %70 : vector<1x64xf32> to vector<2x64xf32>
    %72 = arith.addf %69, %71 : vector<2x64xf32>
    %c0_39 = arith.constant 0 : index
    %c0_40 = arith.constant 0 : index
    %73 = vector.load %arg12[%c0_39, %c0_40] : memref<2x64xf32, #tpu.memory_space<vmem>>, vector<2x64xf32>
    tpu.vector_store %arg12[%c0_39, %c0_40], %72 {strides = array<i32>} : memref<2x64xf32, #tpu.memory_space<vmem>>, vector<2x64xf32>,
    return
  }
  func.func @transform_0(%arg0: i32) -> (i32, i32, i32) {
    %c0_i32 = arith.constant 0 : i32
    %c0_i32_0 = arith.constant 0 : i32
    %c0_i32_1 = arith.constant 0 : i32
    return %arg0, %c0_i32, %c0_i32_0 : i32, i32, i32
  }
  func.func @transform_1(%arg0: i32) -> (i32, i32) {
    %c0_i32 = arith.constant 0 : i32
    %c0_i32_0 = arith.constant 0 : i32
    %c0_i32_1 = arith.constant 0 : i32
    return %c0_i32, %c0_i32_0 : i32, i32
  }
  func.func @transform_2(%arg0: i32) -> (i32, i32) {
    %c0_i32 = arith.constant 0 : i32
    %c0_i32_0 = arith.constant 0 : i32
    %c0_i32_1 = arith.constant 0 : i32
    return %c0_i32, %c0_i32_0 : i32, i32
  }
  func.func @transform_3(%arg0: i32) -> (i32, i32) {
    %c0_i32 = arith.constant 0 : i32
    %c0_i32_0 = arith.constant 0 : i32
    %c0_i32_1 = arith.constant 0 : i32
    return %c0_i32, %c0_i32_0 : i32, i32
  }
  func.func @transform_4(%arg0: i32) -> (i32, i32) {
    %c0_i32 = arith.constant 0 : i32
    %c0_i32_0 = arith.constant 0 : i32
    %c0_i32_1 = arith.constant 0 : i32
    return %c0_i32, %c0_i32_0 : i32, i32
  }
  func.func @transform_5(%arg0: i32) -> (i32, i32) {
    %c0_i32 = arith.constant 0 : i32
    %c0_i32_0 = arith.constant 0 : i32
    %c0_i32_1 = arith.constant 0 : i32
    return %c0_i32, %c0_i32_0 : i32, i32
  }
  func.func @transform_6(%arg0: i32) -> (i32, i32) {
    %c0_i32 = arith.constant 0 : i32
    %c0_i32_0 = arith.constant 0 : i32
    %c0_i32_1 = arith.constant 0 : i32
    return %c0_i32, %c0_i32_0 : i32, i32
  }
  func.func @transform_7(%arg0: i32) -> (i32, i32) {
    %c0_i32 = arith.constant 0 : i32
    %c0_i32_0 = arith.constant 0 : i32
    %c0_i32_1 = arith.constant 0 : i32
    return %c0_i32, %c0_i32_0 : i32, i32
  }
  func.func @transform_8(%arg0: i32) -> (i32, i32) {
    %c0_i32 = arith.constant 0 : i32
    %c0_i32_0 = arith.constant 0 : i32
    %c0_i32_1 = arith.constant 0 : i32
    return %c0_i32, %c0_i32_0 : i32, i32
  }
  func.func @transform_9(%arg0: i32) -> (i32, i32) {
    %c0_i32 = arith.constant 0 : i32
    %c0_i32_0 = arith.constant 0 : i32
    %c0_i32_1 = arith.constant 0 : i32
    return %c0_i32, %c0_i32_0 : i32, i32
  }
  func.func @transform_10(%arg0: i32) -> (i32, i32) {
    %c0_i32 = arith.constant 0 : i32
    %c0_i32_0 = arith.constant 0 : i32
    %c0_i32_1 = arith.constant 0 : i32
    return %c0_i32, %c0_i32_0 : i32, i32
  }
  func.func @transform_11(%arg0: i32) -> (i32, i32) {
    %c0_i32 = arith.constant 0 : i32
    %c0_i32_0 = arith.constant 0 : i32
    return %arg0, %c0_i32 : i32, i32
  }
}

</mosaic_0001>

<llo_original>
// kernel: tpu_custom_call.1
$region0: #{tpu_custom_call.1}
  #allocation0 [shape = 'u32[]', space=smem, size = 0x4, offset = 0x4, fixed_abs, tag = 'smem constant byte address 0x4 - core index']
  #allocation1 [shape = 'u32[144,128]{1,0:T(1,128)}', space=vmem, size = 0x12000, scoped, tag = 'internal scratch']
  %s0 = inlined_call_operand.vmem [shape: f32[2,16,32], index: 0, kind: input, shape index: {}]
  %s1 = inlined_call_operand.hbm [shape: f32[1,32], index: 1, kind: input, shape index: {}]
  %s2 = inlined_call_operand.hbm [shape: f32[16,32], index: 2, kind: input, shape index: {}]
  %s3 = inlined_call_operand.hbm [shape: bf16[32,32], index: 3, kind: input, shape index: {}]
  %s4 = inlined_call_operand.hbm [shape: f32[1,32], index: 4, kind: input, shape index: {}]
  %s5 = inlined_call_operand.hbm [shape: bf16[32,64], index: 5, kind: input, shape index: {}]
  %s6 = inlined_call_operand.hbm [shape: f32[1,64], index: 6, kind: input, shape index: {}]
  %s7 = inlined_call_operand.vmem [shape: bf16[32,64], index: 7, kind: input, shape index: {}]
  %s8 = inlined_call_operand.hbm [shape: f32[1,64], index: 8, kind: input, shape index: {}]
  %s9 = inlined_call_operand.vmem [shape: f32[32,4], index: 9, kind: input, shape index: {}]
  %s10 = inlined_call_operand.hbm [shape: f32[4,32], index: 10, kind: input, shape index: {}]
  %s11 = inlined_call_operand.hbm [shape: f32[2,64], index: 11, kind: output, shape index: {}]
  %s12 = sld [smem:[#allocation0]]
  $region86: #{tpu_custom_call.1} parent=0
    _
  %s14 = ssub.s32 1, %s12
  %s15 = scalar_select 0, %s14, %s12
  $region1: #{tpu_custom_call.1} parent=0
    #allocation2 [shape = 'u8[512]{0}', space=vmem, size = 0x400, scoped, tag = 'input window, operand 1, single buffered']
    #allocation3 [shape = 's32[1]{0}', space=sflag, size = 0x4, scoped, tag = 'scoped memory for tpu_custom_call.1']
    #allocation4 [shape = 's32[1]{0}', space=sflag, size = 0x4, scoped, tag = 'scoped memory for tpu_custom_call.1']
    #allocation5 [shape = 'u8[8192]{0}', space=vmem, size = 0x2000, scoped, tag = 'input window, operand 2, single buffered']
    #allocation6 [shape = 's32[1]{0}', space=sflag, size = 0x4, scoped, tag = 'scoped memory for tpu_custom_call.1']
    #allocation7 [shape = 'u8[8192]{0}', space=vmem, size = 0x2000, scoped, tag = 'input window, operand 3, single buffered']
    #allocation8 [shape = 'u8[512]{0}', space=vmem, size = 0x400, scoped, tag = 'input window, operand 4, single buffered']
    #allocation9 [shape = 's32[1]{0}', space=sflag, size = 0x4, scoped, tag = 'scoped memory for tpu_custom_call.1']
    #allocation10 [shape = 'u8[8192]{0}', space=vmem, size = 0x2000, scoped, tag = 'input window, operand 5, single buffered']
    #allocation11 [shape = 'u8[512]{0}', space=vmem, size = 0x400, scoped, tag = 'input window, operand 6, single buffered']
    #allocation12 [shape = 's32[1]{0}', space=sflag, size = 0x4, scoped, tag = 'scoped memory for tpu_custom_call.1']
    #allocation13 [shape = 'u8[512]{0}', space=vmem, size = 0x400, scoped, tag = 'input window, operand 8, single buffered']
    #allocation14 [shape = 'u8[2048]{0}', space=vmem, size = 0x800, scoped, tag = 'input window, operand 10, single buffered']
    #allocation15 [shape = 's32[1]{0}', space=sflag, size = 0x4, scoped, tag = 'scoped memory for tpu_custom_call.1']
    #allocation16 [shape = 'u8[1024]{0}', space=vmem, size = 0x400, scoped, tag = 'output window, operand 0, single buffered']
    %16 = vsyncpa [#allocation3], 0
    %17 = vsyncpa [#allocation6], 0
    %18 = vsyncpa [#allocation9], 0
    %19 = vsyncpa [#allocation12], 0
    %20 = vsyncpa [#allocation15], 0
    %21 = vsyncpa [#allocation4], 0
    // Predicated region
    $region2: #{tpu_custom_call.1} parent=1 // pred_check
      _
    $region3: #{tpu_custom_call.1} parent=1 // pred_check_branch
      %23 = sbr.rel (0) target = $region5
    $region4: #{tpu_custom_call.1} parent=1 // pred_region
      _
    $region5: #{tpu_custom_call.1} parent=1 // pred_fallthru
      _
    // Predicated region
    $region6: #{tpu_custom_call.1} parent=1 // pred_check
      _
    $region7: #{tpu_custom_call.1} parent=1 // pred_check_branch
      %25 = sbr.rel (0) target = $region9
    $region8: #{tpu_custom_call.1} parent=1 // pred_region
      %s27 = ssub.s32 16, 16
      %28 = vsyncadd [#allocation3], %s27
      %s30 = sshll.u32 [#allocation2], 4
      %s31 = int_to_ptr.vmem [resolvable:$true] %s30
      %33 = dma.hbm_to_vmem [thread:$0]  %s1, 16, %s31, [#allocation3]
    $region9: #{tpu_custom_call.1} parent=1 // pred_fallthru
      _
    // Predicated region
    $region10: #{tpu_custom_call.1} parent=1 // pred_check
      _
    $region11: #{tpu_custom_call.1} parent=1 // pred_check_branch
      %35 = sbr.rel (0) target = $region13
    $region12: #{tpu_custom_call.1} parent=1 // pred_region
      %s37 = ssub.s32 256, 256
      %38 = vsyncadd [#allocation6], %s37
      %s39 = sshll.u32 [#allocation5], 4
      %s40 = int_to_ptr.vmem [resolvable:$true] %s39
      %45 = dma.hbm_to_vmem [thread:$0]  %s2, 256, %s40, [#allocation6], 128, 128, 8
    $region13: #{tpu_custom_call.1} parent=1 // pred_fallthru
      _
    // Predicated region
    $region14: #{tpu_custom_call.1} parent=1 // pred_check
      _
    $region15: #{tpu_custom_call.1} parent=1 // pred_check_branch
      %47 = sbr.rel (0) target = $region17
    $region16: #{tpu_custom_call.1} parent=1 // pred_region
      %s49 = ssub.s32 256, 256
      %50 = vsyncadd [#allocation6], %s49
      %s51 = sshll.u32 [#allocation7], 4
      %s52 = int_to_ptr.vmem [resolvable:$true] %s51
      %57 = dma.hbm_to_vmem [thread:$0]  %s3, 256, %s52, [#allocation6], 64, 64, 4
    $region17: #{tpu_custom_call.1} parent=1 // pred_fallthru
      _
    // Predicated region
    $region18: #{tpu_custom_call.1} parent=1 // pred_check
      _
    $region19: #{tpu_custom_call.1} parent=1 // pred_check_branch
      %59 = sbr.rel (0) target = $region21
    $region20: #{tpu_custom_call.1} parent=1 // pred_region
      %s61 = ssub.s32 16, 16
      %62 = vsyncadd [#allocation9], %s61
      %s64 = sshll.u32 [#allocation8], 4
      %s65 = int_to_ptr.vmem [resolvable:$true] %s64
      %67 = dma.hbm_to_vmem [thread:$0]  %s4, 16, %s65, [#allocation9]
    $region21: #{tpu_custom_call.1} parent=1 // pred_fallthru
      _
    // Predicated region
    $region22: #{tpu_custom_call.1} parent=1 // pred_check
      _
    $region23: #{tpu_custom_call.1} parent=1 // pred_check_branch
      %69 = sbr.rel (0) target = $region25
    $region24: #{tpu_custom_call.1} parent=1 // pred_region
      %s71 = ssub.s32 256, 256
      %72 = vsyncadd [#allocation9], %s71
      %s73 = sshll.u32 [#allocation10], 4
      %s74 = int_to_ptr.vmem [resolvable:$true] %s73
      %79 = dma.hbm_to_vmem [thread:$0]  %s5, 256, %s74, [#allocation9], 64, 64, 4
    $region25: #{tpu_custom_call.1} parent=1 // pred_fallthru
      _
    // Predicated region
    $region26: #{tpu_custom_call.1} parent=1 // pred_check
      _
    $region27: #{tpu_custom_call.1} parent=1 // pred_check_branch
      %81 = sbr.rel (0) target = $region29
    $region28: #{tpu_custom_call.1} parent=1 // pred_region
      %s83 = ssub.s32 16, 16
      %84 = vsyncadd [#allocation12], %s83
      %s86 = sshll.u32 [#allocation11], 4
      %s87 = int_to_ptr.vmem [resolvable:$true] %s86
      %89 = dma.hbm_to_vmem [thread:$0]  %s6, 16, %s87, [#allocation12]
    $region29: #{tpu_custom_call.1} parent=1 // pred_fallthru
      _
    // Predicated region
    $region30: #{tpu_custom_call.1} parent=1 // pred_check
      _
    $region31: #{tpu_custom_call.1} parent=1 // pred_check_branch
      %91 = sbr.rel (0) target = $region33
    $region32: #{tpu_custom_call.1} parent=1 // pred_region
      _
    $region33: #{tpu_custom_call.1} parent=1 // pred_fallthru
      _
    // Predicated region
    $region34: #{tpu_custom_call.1} parent=1 // pred_check
      _
    $region35: #{tpu_custom_call.1} parent=1 // pred_check_branch
      %93 = sbr.rel (0) target = $region37
    $region36: #{tpu_custom_call.1} parent=1 // pred_region
      %s95 = ssub.s32 16, 16
      %96 = vsyncadd [#allocation12], %s95
      %s98 = sshll.u32 [#allocation13], 4
      %s99 = int_to_ptr.vmem [resolvable:$true] %s98
      %101 = dma.hbm_to_vmem [thread:$0]  %s8, 16, %s99, [#allocation12]
    $region37: #{tpu_custom_call.1} parent=1 // pred_fallthru
      _
    // Predicated region
    $region38: #{tpu_custom_call.1} parent=1 // pred_check
      _
    $region39: #{tpu_custom_call.1} parent=1 // pred_check_branch
      %103 = sbr.rel (0) target = $region41
    $region40: #{tpu_custom_call.1} parent=1 // pred_region
      _
    $region41: #{tpu_custom_call.1} parent=1 // pred_fallthru
      _
    // Predicated region
    $region42: #{tpu_custom_call.1} parent=1 // pred_check
      _
    $region43: #{tpu_custom_call.1} parent=1 // pred_check_branch
      %105 = sbr.rel (0) target = $region45
    $region44: #{tpu_custom_call.1} parent=1 // pred_region
      %s107 = ssub.s32 64, 64
      %108 = vsyncadd [#allocation15], %s107
      %s110 = sshll.u32 [#allocation14], 4
      %s111 = int_to_ptr.vmem [resolvable:$true] %s110
      %113 = dma.hbm_to_vmem [thread:$0]  %s10, 64, %s111, [#allocation15]
    $region45: #{tpu_custom_call.1} parent=1 // pred_fallthru
      _
    // Predicated region
    $region46: #{tpu_custom_call.1} parent=1 // pred_check
      _
    $region47: #{tpu_custom_call.1} parent=1 // pred_check_branch
      %115 = sbr.rel (0) target = $region49
    $region48: #{tpu_custom_call.1} parent=1 // pred_region
      %116 = dma.done [#allocation3], 16
    $region49: #{tpu_custom_call.1} parent=1 // pred_fallthru
      _
    // Predicated region
    $region50: #{tpu_custom_call.1} parent=1 // pred_check
      _
    $region51: #{tpu_custom_call.1} parent=1 // pred_check_branch
      %118 = sbr.rel (0) target = $region53
    $region52: #{tpu_custom_call.1} parent=1 // pred_region
      %119 = dma.done [#allocation6], 256
    $region53: #{tpu_custom_call.1} parent=1 // pred_fallthru
      _
    // Predicated region
    $region54: #{tpu_custom_call.1} parent=1 // pred_check
      _
    $region55: #{tpu_custom_call.1} parent=1 // pred_check_branch
      %121 = sbr.rel (0) target = $region57
    $region56: #{tpu_custom_call.1} parent=1 // pred_region
      %122 = dma.done [#allocation6], 256
    $region57: #{tpu_custom_call.1} parent=1 // pred_fallthru
      _
    // Predicated region
    $region58: #{tpu_custom_call.1} parent=1 // pred_check
      _
    $region59: #{tpu_custom_call.1} parent=1 // pred_check_branch
      %124 = sbr.rel (0) target = $region61
    $region60: #{tpu_custom_call.1} parent=1 // pred_region
      %125 = dma.done [#allocation9], 16
    $region61: #{tpu_custom_call.1} parent=1 // pred_fallthru
      _
    // Predicated region
    $region62: #{tpu_custom_call.1} parent=1 // pred_check
      _
    $region63: #{tpu_custom_call.1} parent=1 // pred_check_branch
      %127 = sbr.rel (0) target = $region65
    $region64: #{tpu_custom_call.1} parent=1 // pred_region
      %128 = dma.done [#allocation9], 256
    $region65: #{tpu_custom_call.1} parent=1 // pred_fallthru
      _
    // Predicated region
    $region66: #{tpu_custom_call.1} parent=1 // pred_check
      _
    $region67: #{tpu_custom_call.1} parent=1 // pred_check_branch
      %130 = sbr.rel (0) target = $region69
    $region68: #{tpu_custom_call.1} parent=1 // pred_region
      %131 = dma.done [#allocation12], 16
    $region69: #{tpu_custom_call.1} parent=1 // pred_fallthru
      _
    // Predicated region
    $region70: #{tpu_custom_call.1} parent=1 // pred_check
      _
    $region71: #{tpu_custom_call.1} parent=1 // pred_check_branch
      %133 = sbr.rel (0) target = $region73
    $region72: #{tpu_custom_call.1} parent=1 // pred_region
      %134 = dma.done [#allocation12], 16
    $region73: #{tpu_custom_call.1} parent=1 // pred_fallthru
      _
    // Predicated region
    $region74: #{tpu_custom_call.1} parent=1 // pred_check
      _
    $region75: #{tpu_custom_call.1} parent=1 // pred_check_branch
      %136 = sbr.rel (0) target = $region77
    $region76: #{tpu_custom_call.1} parent=1 // pred_region
      %137 = dma.done [#allocation15], 64
    $region77: #{tpu_custom_call.1} parent=1 // pred_fallthru
      _
    %v139 = vld [vmem:[%s0] sm:$0xff]
    %v140 = vld [vmem:[%s0 + $0x8] sm:$0xff]
    %v141 = vld [vmem:[%s0 + $0x10] sm:$0xff]
    %v142 = vld [vmem:[%s0 + $0x18] sm:$0xff]
    %vm143 = vcmask 261120
    %v144 = vsel %vm143, %v139, 0.0
    %v145 = vsel %vm143, %v140, 0.0
    %v146 = vadd.f32 %v144, %v145
    %v147 = vrot.slane %v146, 4
    %v148 = vadd.f32 %v146, %v147
    %v149 = vrot.slane %v148, 2
    %v150 = vadd.f32 %v148, %v149
    %v151 = vrot.slane %v150, 1
    %v152 = vadd.f32 %v150, %v151
    %v153 = vsel %vm143, %v141, 0.0
    %v154 = vsel %vm143, %v142, 0.0
    %v155 = vadd.f32 %v153, %v154
    %v156 = vrot.slane %v155, 4
    %v157 = vadd.f32 %v155, %v156
    %v158 = vrot.slane %v157, 2
    %v159 = vadd.f32 %v157, %v158
    %v160 = vrot.slane %v159, 1
    %v161 = vadd.f32 %v159, %v160
    %v162 = vrcp.pop 16.0
    %v163 = vmul.f32 %v152, %v162
    %v164 = vmul.f32 %v161, %v162
    %v165 = vld [vmem:[#allocation2] sm:$0x1]
    %v167 = vlaneseq
    %v168 = vshrl.u32 %v167, 7
    %v169 = vsub.s32 0, %v168
    %v170 = vrot.slane %v165, %v169
    %v172 = vadd.f32 %v163, %v170
    %v173 = vadd.f32 %v164, %v170
    %v174 = vld [vmem:[#allocation5] sm:$0xff]
    %v175 = vld [vmem:[#allocation5 + $0x8] sm:$0xff]
    %v176 = vadd.f32 %v139, %v174
    %v177 = vadd.f32 %v140, %v175
    %v178 = vadd.f32 %v141, %v174
    %v179 = vadd.f32 %v142, %v175
    %v180 = vpack.c.bf16 %v172, %v172
    %v181 = vpack.c.bf16 %v173, %v173
    %v182 = vld [vmem:[#allocation7] sm:$0xf]
    %v183 = vld [vmem:[#allocation7 + $0x4] sm:$0xf]
    %v184 = vld [vmem:[#allocation7 + $0x8] sm:$0xf]
    %v185 = vld [vmem:[#allocation7 + $0xc] sm:$0xf]
    %v186 = vld [vmem:[#allocation8] sm:$0x1]
    %v188 = vlaneseq
    %v189 = vshrl.u32 %v188, 7
    %v190 = vsub.s32 0, %v189
    %v191 = vrot.slane %v186, %v190
    %v195 = vunpack.c.l.b16 %v180
    %v196 = vunpack.c.l.b16 %v181
    %v197 = vrot.slane %v196, 7
    %vm198 = vcmask 1041409
    %v199 = vsel %vm198, %v197, %v195
    %v200 = vpack.c.b16 %v199, %v199
    %v205 = vunpack.c.l.b16 %v182
    %v206 = vunpack.c.l.b16 %v183
    %v207 = vunpack.c.l.b16 %v184
    %v208 = vunpack.c.l.b16 %v185
    %v209 = vpack.c.b16 %v206, %v205
    %v210 = vpack.c.b16 %v208, %v207
    %v214 = vsel %vm143, %v200, 0
    %216 = vmatprep.subr.bf16.mxu0 0
    %217 = vmatpush1.bf16.msra.mxu0 0
    %218 = vmatprep.subr.bf16.mxu0 0
    %219 = vmatpush1.bf16.msra.mxu0 0
    %220 = vmatprep.subr.bf16.mxu0 0
    %221 = vmatpush1.bf16.msra.mxu0 0
    %222 = vmatprep.subr.bf16.mxu0 0
    %223 = vmatpush1.bf16.msra.mxu0 0
    %224 = vmatprep.subr.bf16.mxu0 0
    %225 = vmatpush1.bf16.msra.mxu0 0
    %226 = vmatprep.subr.bf16.mxu0 0
    %227 = vmatpush1.bf16.msra.mxu0 0
    %228 = vmatprep.subr.bf16.mxu0 0
    %229 = vmatpush1.bf16.msra.mxu0 %v210
    %230 = vmatprep.subr.bf16.mxu0 0
    %231 = vmatpush1.bf16.msra.mxu0 %v209
    %232 = vmatprep.subr.bf16.mxu0 0
    %233 = vmatpush2.bf16.msra.mxu0 0
    %234 = vmatprep.subr.bf16.mxu0 0
    %235 = vmatpush2.bf16.msra.mxu0 0
    %236 = vmatprep.subr.bf16.mxu0 0
    %237 = vmatpush2.bf16.msra.mxu0 0
    %238 = vmatprep.subr.bf16.mxu0 0
    %239 = vmatpush2.bf16.msra.mxu0 0
    %240 = vmatprep.subr.bf16.mxu0 0
    %241 = vmatpush2.bf16.msra.mxu0 0
    %242 = vmatprep.subr.bf16.mxu0 0
    %243 = vmatpush2.bf16.msra.mxu0 0
    %244 = vmatprep.subr.bf16.mxu0 0
    %245 = vmatpush2.bf16.msra.mxu0 0
    %246 = vmatprep.subr.bf16.mxu0 0
    %247 = vmatpush2.bf16.msra.mxu0 0
    %248 = vmatprep.mubr.bf16.mxu0 0
    %249 = vmatmul.mubr.bf16.gmra.mxu0 %v214
    %v250 = vpop.f32.mrf.mxu0
    %v251 = vadd.f32 %v191, %v250
    %v252 = vpop.f32.mrf.mxu0
    %v253 = vpop.f32.mrf.mxu0
    %v254 = vpop.f32.mrf.mxu0
    %255 = vdwg.mxu0
    %v256 = vpack.c.bf16 %v177, %v176
    %v257 = vpack.c.bf16 %v179, %v178
    %v258 = vld [vmem:[#allocation10] sm:$0xf]
    %v259 = vld [vmem:[#allocation10 + $0x4] sm:$0xf]
    %v260 = vld [vmem:[#allocation10 + $0x8] sm:$0xf]
    %v261 = vld [vmem:[#allocation10 + $0xc] sm:$0xf]
    %v262 = vld [vmem:[#allocation11] sm:$0x1]
    %v264 = vlaneseq
    %v265 = vshrl.u32 %v264, 7
    %v266 = vsub.s32 0, %v265
    %v267 = vrot.slane %v262, %v266
    %v273 = vunpack.c.l.b16 %v258
    %v274 = vunpack.c.l.b16 %v259
    %v275 = vunpack.c.l.b16 %v260
    %v276 = vunpack.c.l.b16 %v261
    %v277 = vpack.c.b16 %v274, %v273
    %v278 = vpack.c.b16 %v276, %v275
    %v282 = vsel %vm143, %v256, 0
    %v285 = vsel %vm143, %v257, 0
    %287 = vmatprep.subr.bf16.mxu0 0
    %288 = vmatpush1.bf16.msra.mxu0 0
    %289 = vmatprep.subr.bf16.mxu0 0
    %290 = vmatpush1.bf16.msra.mxu0 0
    %291 = vmatprep.subr.bf16.mxu0 0
    %292 = vmatpush1.bf16.msra.mxu0 0
    %293 = vmatprep.subr.bf16.mxu0 0
    %294 = vmatpush1.bf16.msra.mxu0 0
    %295 = vmatprep.subr.bf16.mxu0 0
    %296 = vmatpush1.bf16.msra.mxu0 0
    %297 = vmatprep.subr.bf16.mxu0 0
    %298 = vmatpush1.bf16.msra.mxu0 0
    %299 = vmatprep.subr.bf16.mxu0 0
    %300 = vmatpush1.bf16.msra.mxu0 %v278
    %301 = vmatprep.subr.bf16.mxu0 0
    %302 = vmatpush1.bf16.msra.mxu0 %v277
    %303 = vmatprep.subr.bf16.mxu0 0
    %304 = vmatpush2.bf16.msra.mxu0 0
    %305 = vmatprep.subr.bf16.mxu0 0
    %306 = vmatpush2.bf16.msra.mxu0 0
    %307 = vmatprep.subr.bf16.mxu0 0
    %308 = vmatpush2.bf16.msra.mxu0 0
    %309 = vmatprep.subr.bf16.mxu0 0
    %310 = vmatpush2.bf16.msra.mxu0 0
    %311 = vmatprep.subr.bf16.mxu0 0
    %312 = vmatpush2.bf16.msra.mxu0 0
    %313 = vmatprep.subr.bf16.mxu0 0
    %314 = vmatpush2.bf16.msra.mxu0 0
    %315 = vmatprep.subr.bf16.mxu0 0
    %316 = vmatpush2.bf16.msra.mxu0 0
    %317 = vmatprep.subr.bf16.mxu0 0
    %318 = vmatpush2.bf16.msra.mxu0 0
    %319 = vmatprep.mubr.bf16.mxu0 0
    %320 = vmatmul.mubr.bf16.gmra.mxu0 %v282
    %v321 = vpop.f32.mrf.mxu0
    %v322 = vadd.f32 %v267, %v321
    %v323 = vpop.f32.mrf.mxu0
    %v324 = vpop.f32.mrf.mxu0
    %v325 = vadd.f32 %v267, %v324
    %v326 = vpop.f32.mrf.mxu0
    %327 = vmatprep.mubr.bf16.mxu0 0
    %328 = vmatmul.mubr.bf16.gmra.mxu0 %v285
    %v329 = vpop.f32.mrf.mxu0
    %v330 = vadd.f32 %v267, %v329
    %v331 = vpop.f32.mrf.mxu0
    %v332 = vpop.f32.mrf.mxu0
    %v333 = vadd.f32 %v267, %v332
    %v334 = vpop.f32.mrf.mxu0
    %335 = vdwg.mxu0
    %336 = vmatprep.subr.bf16.mxu0 0
    %337 = vmatpush1.bf16.msra.mxu0 0
    %338 = vmatprep.subr.bf16.mxu0 0
    %339 = vmatpush1.bf16.msra.mxu0 0
    %340 = vmatprep.subr.bf16.mxu0 0
    %341 = vmatpush1.bf16.msra.mxu0 0
    %342 = vmatprep.subr.bf16.mxu0 0
    %343 = vmatpush1.bf16.msra.mxu0 0
    %344 = vmatprep.subr.bf16.mxu0 0
    %345 = vmatpush1.bf16.msra.mxu0 0
    %346 = vmatprep.subr.bf16.mxu0 0
    %347 = vmatpush1.bf16.msra.mxu0 0
    %348 = vmatprep.subr.bf16.mxu0 0
    %349 = vmatpush1.bf16.msra.mxu0 %v278
    %350 = vmatprep.subr.bf16.mxu0 0
    %351 = vmatpush1.bf16.msra.mxu0 %v277
    %352 = vmatprep.subr.bf16.mxu0 0
    %353 = vmatpush2.bf16.msra.mxu0 0
    %354 = vmatprep.subr.bf16.mxu0 0
    %355 = vmatpush2.bf16.msra.mxu0 0
    %356 = vmatprep.subr.bf16.mxu0 0
    %357 = vmatpush2.bf16.msra.mxu0 0
    %358 = vmatprep.subr.bf16.mxu0 0
    %359 = vmatpush2.bf16.msra.mxu0 0
    %360 = vmatprep.subr.bf16.mxu0 0
    %361 = vmatpush2.bf16.msra.mxu0 0
    %362 = vmatprep.subr.bf16.mxu0 0
    %363 = vmatpush2.bf16.msra.mxu0 0
    %364 = vmatprep.subr.bf16.mxu0 0
    %365 = vmatpush2.bf16.msra.mxu0 0
    %366 = vmatprep.subr.bf16.mxu0 0
    %367 = vmatpush2.bf16.msra.mxu0 0
    %368 = vmatprep.mubr.bf16.mxu0 0
    %369 = vmatmul.mubr.bf16.gmra.mxu0 %v214
    %v370 = vpop.f32.mrf.mxu0
    %v371 = vadd.f32 %v267, %v370
    %v372 = vpop.f32.mrf.mxu0
    %v373 = vpop.f32.mrf.mxu0
    %v374 = vpop.f32.mrf.mxu0
    %375 = vdwg.mxu0
    %v376 = vld [vmem:[%s9] sm:$0xff]
    %v377 = vld [vmem:[%s9 + $0x8] sm:$0xff]
    %v378 = vld [vmem:[%s9 + $0x10] sm:$0xff]
    %v379 = vld [vmem:[%s9 + $0x18] sm:$0xff]
    %v380 = vld [vmem:[#allocation14] sm:$0xf]
    %v383 = vunpack.c.l.s4 1966171168
    %v384 = vunpack.c.0.s8 %v383
    %v385 = vlaneseq
    %v386 = vshrl.u32 %v385, 7
    %v387 = vsub.s32 %v384, %v386
    %v388 = vrot.slane %v251, %v387
    %v389 = vcombine.high %v388, %v388
    %v391 = vunpack.c.l.s4 1966171168
    %v392 = vunpack.c.0.s8 %v391
    %v393 = vlaneseq
    %v394 = vshrl.u32 %v393, 7
    %v395 = vsub.s32 %v392, %v394
    %v396 = vrot.slane %v388, %v395
    %v398 = vunpack.c.l.s4 1966171168
    %v399 = vunpack.c.0.s8 %v398
    %v400 = vlaneseq
    %v401 = vshrl.u32 %v400, 7
    %v402 = vsub.s32 %v399, %v401
    %v403 = vrot.slane %v389, %v402
    %v404 = vlaneseq
    %v405 = vshrl.u32 %v404, 7
    %v406 = vsub.s32 0, %v405
    %v407 = vrot.slane %v396, %v406
    %v408 = vlaneseq
    %v409 = vshrl.u32 %v408, 7
    %v410 = vsub.s32 0, %v409
    %v411 = vrot.slane %v403, %v410
    %v414 = vmul.f32 %v322, %v407
    %v415 = vmul.f32 %v325, %v407
    %v416 = vmul.f32 %v330, %v411
    %v417 = vmul.f32 %v333, %v411
    %v419 = vsel %vm143, %v414, 0
    %v422 = vsel %vm143, %v415, 0
    %v425 = vsel %vm143, %v416, 0
    %v428 = vsel %vm143, %v417, 0
    %430 = vmatprep.subr.mxu0 0.0
    %431 = vmatpush1.msra.mxu0 0.0
    %432 = vmatprep.subr.mxu0 0.0
    %433 = vmatpush1.msra.mxu0 0.0
    %434 = vmatprep.subr.mxu0 0.0
    %435 = vmatpush1.msra.mxu0 0.0
    %436 = vmatprep.subr.mxu0 0.0
    %437 = vmatpush1.msra.mxu0 0.0
    %438 = vmatprep.subr.mxu0 0.0
    %439 = vmatpush1.msra.mxu0 0.0
    %440 = vmatprep.subr.mxu0 0.0
    %441 = vmatpush1.msra.mxu0 0.0
    %442 = vmatprep.subr.mxu0 0.0
    %443 = vmatpush1.msra.mxu0 0.0
    %444 = vmatprep.subr.mxu0 0.0
    %445 = vmatpush1.msra.mxu0 0.0
    %446 = vmatprep.subr.mxu0 0.0
    %447 = vmatpush1.msra.mxu0 0.0
    %448 = vmatprep.subr.mxu0 0.0
    %449 = vmatpush1.msra.mxu0 0.0
    %450 = vmatprep.subr.mxu0 0.0
    %451 = vmatpush1.msra.mxu0 0.0
    %452 = vmatprep.subr.mxu0 0.0
    %453 = vmatpush1.msra.mxu0 0.0
    %454 = vmatprep.subr.mxu0 0.0
    %455 = vmatpush1.msra.mxu0 %v379
    %456 = vmatprep.subr.mxu0 0.0
    %457 = vmatpush1.msra.mxu0 %v378
    %458 = vmatprep.subr.mxu0 0.0
    %459 = vmatpush1.msra.mxu0 %v377
    %460 = vmatprep.subr.mxu0 0.0
    %461 = vmatpush1.msra.mxu0 %v376
    %462 = vmatprep.subr.mxu0 0.0
    %463 = vmatpush2.msra.mxu0 0.0
    %464 = vmatprep.subr.mxu0 0.0
    %465 = vmatpush2.msra.mxu0 0.0
    %466 = vmatprep.subr.mxu0 0.0
    %467 = vmatpush2.msra.mxu0 0.0
    %468 = vmatprep.subr.mxu0 0.0
    %469 = vmatpush2.msra.mxu0 0.0
    %470 = vmatprep.subr.mxu0 0.0
    %471 = vmatpush2.msra.mxu0 0.0
    %472 = vmatprep.subr.mxu0 0.0
    %473 = vmatpush2.msra.mxu0 0.0
    %474 = vmatprep.subr.mxu0 0.0
    %475 = vmatpush2.msra.mxu0 0.0
    %476 = vmatprep.subr.mxu0 0.0
    %477 = vmatpush2.msra.mxu0 0.0
    %478 = vmatprep.subr.mxu0 0.0
    %479 = vmatpush2.msra.mxu0 0.0
    %480 = vmatprep.subr.mxu0 0.0
    %481 = vmatpush2.msra.mxu0 0.0
    %482 = vmatprep.subr.mxu0 0.0
    %483 = vmatpush2.msra.mxu0 0.0
    %484 = vmatprep.subr.mxu0 0.0
    %485 = vmatpush2.msra.mxu0 0.0
    %486 = vmatprep.subr.mxu0 0.0
    %487 = vmatpush2.msra.mxu0 0.0
    %488 = vmatprep.subr.mxu0 0.0
    %489 = vmatpush2.msra.mxu0 0.0
    %490 = vmatprep.subr.mxu0 0.0
    %491 = vmatpush2.msra.mxu0 0.0
    %492 = vmatprep.subr.mxu0 0.0
    %493 = vmatpush2.msra.mxu0 0.0
    %494 = vmatprep.mubr.f32.mxu0 0.0
    %495 = vmatmul.mubr.f32.gmra.mxu0 %v419
    %v496 = vpop.f32.mrf.mxu0
    %v497 = vadd.f32 0.0, %v496
    %v498 = vpop.f32.mrf.mxu0
    %499 = vmatprep.mubr.f32.mxu0 0.0
    %500 = vmatmul.mubr.f32.gmra.mxu0 %v422
    %v501 = vpop.f32.mrf.mxu0
    %v502 = vadd.f32 0.0, %v501
    %v503 = vpop.f32.mrf.mxu0
    %504 = vmatprep.mubr.f32.mxu0 0.0
    %505 = vmatmul.mubr.f32.gmra.mxu0 %v425
    %v506 = vpop.f32.mrf.mxu0
    %v507 = vadd.f32 0.0, %v506
    %v508 = vpop.f32.mrf.mxu0
    %509 = vmatprep.mubr.f32.mxu0 0.0
    %510 = vmatmul.mubr.f32.gmra.mxu0 %v428
    %v511 = vpop.f32.mrf.mxu0
    %v512 = vadd.f32 0.0, %v511
    %v513 = vpop.f32.mrf.mxu0
    %514 = vdwg.mxu0
    %v515 = vmul.f32 %v371, %v251
    %v517 = vsel %vm143, %v515, 0
    %519 = vmatprep.subr.mxu0 0.0
    %520 = vmatpush1.msra.mxu0 0.0
    %521 = vmatprep.subr.mxu0 0.0
    %522 = vmatpush1.msra.mxu0 0.0
    %523 = vmatprep.subr.mxu0 0.0
    %524 = vmatpush1.msra.mxu0 0.0
    %525 = vmatprep.subr.mxu0 0.0
    %526 = vmatpush1.msra.mxu0 0.0
    %527 = vmatprep.subr.mxu0 0.0
    %528 = vmatpush1.msra.mxu0 0.0
    %529 = vmatprep.subr.mxu0 0.0
    %530 = vmatpush1.msra.mxu0 0.0
    %531 = vmatprep.subr.mxu0 0.0
    %532 = vmatpush1.msra.mxu0 0.0
    %533 = vmatprep.subr.mxu0 0.0
    %534 = vmatpush1.msra.mxu0 0.0
    %535 = vmatprep.subr.mxu0 0.0
    %536 = vmatpush1.msra.mxu0 0.0
    %537 = vmatprep.subr.mxu0 0.0
    %538 = vmatpush1.msra.mxu0 0.0
    %539 = vmatprep.subr.mxu0 0.0
    %540 = vmatpush1.msra.mxu0 0.0
    %541 = vmatprep.subr.mxu0 0.0
    %542 = vmatpush1.msra.mxu0 0.0
    %543 = vmatprep.subr.mxu0 0.0
    %544 = vmatpush1.msra.mxu0 %v379
    %545 = vmatprep.subr.mxu0 0.0
    %546 = vmatpush1.msra.mxu0 %v378
    %547 = vmatprep.subr.mxu0 0.0
    %548 = vmatpush1.msra.mxu0 %v377
    %549 = vmatprep.subr.mxu0 0.0
    %550 = vmatpush1.msra.mxu0 %v376
    %551 = vmatprep.subr.mxu0 0.0
    %552 = vmatpush2.msra.mxu0 0.0
    %553 = vmatprep.subr.mxu0 0.0
    %554 = vmatpush2.msra.mxu0 0.0
    %555 = vmatprep.subr.mxu0 0.0
    %556 = vmatpush2.msra.mxu0 0.0
    %557 = vmatprep.subr.mxu0 0.0
    %558 = vmatpush2.msra.mxu0 0.0
    %559 = vmatprep.subr.mxu0 0.0
    %560 = vmatpush2.msra.mxu0 0.0
    %561 = vmatprep.subr.mxu0 0.0
    %562 = vmatpush2.msra.mxu0 0.0
    %563 = vmatprep.subr.mxu0 0.0
    %564 = vmatpush2.msra.mxu0 0.0
    %565 = vmatprep.subr.mxu0 0.0
    %566 = vmatpush2.msra.mxu0 0.0
    %567 = vmatprep.subr.mxu0 0.0
    %568 = vmatpush2.msra.mxu0 0.0
    %569 = vmatprep.subr.mxu0 0.0
    %570 = vmatpush2.msra.mxu0 0.0
    %571 = vmatprep.subr.mxu0 0.0
    %572 = vmatpush2.msra.mxu0 0.0
    %573 = vmatprep.subr.mxu0 0.0
    %574 = vmatpush2.msra.mxu0 0.0
    %575 = vmatprep.subr.mxu0 0.0
    %576 = vmatpush2.msra.mxu0 0.0
    %577 = vmatprep.subr.mxu0 0.0
    %578 = vmatpush2.msra.mxu0 0.0
    %579 = vmatprep.subr.mxu0 0.0
    %580 = vmatpush2.msra.mxu0 0.0
    %581 = vmatprep.subr.mxu0 0.0
    %582 = vmatpush2.msra.mxu0 0.0
    %583 = vmatprep.mubr.f32.mxu0 0.0
    %584 = vmatmul.mubr.f32.gmra.mxu0 %v517
    %v585 = vpop.f32.mrf.mxu0
    %v586 = vadd.f32 0.0, %v585
    %v587 = vpop.f32.mrf.mxu0
    %588 = vdwg.mxu0
    %vm589 = vcmask 31744
    %v590 = vsel %vm589, %v497, -inf
    %v591 = vsel %vm589, %v502, -inf
    %v592 = vmax.f32 %v590, %v591
    %v593 = vrot.slane %v592, 4
    %v594 = vmax.f32 %v592, %v593
    %v595 = vrot.slane %v594, 2
    %v596 = vmax.f32 %v594, %v595
    %v597 = vrot.slane %v596, 1
    %v598 = vmax.f32 %v596, %v597
    %v599 = vsel %vm589, %v507, -inf
    %v600 = vsel %vm589, %v512, -inf
    %v601 = vmax.f32 %v599, %v600
    %v602 = vrot.slane %v601, 4
    %v603 = vmax.f32 %v601, %v602
    %v604 = vrot.slane %v603, 2
    %v605 = vmax.f32 %v603, %v604
    %v606 = vrot.slane %v605, 1
    %v607 = vmax.f32 %v605, %v606
    %v609 = vrot.slane %v586, 1
    %v612 = vmax.f32 %v598, %v586
    %v613 = vmax.f32 %v607, %v609
    %v614 = vlaneseq
    %v615 = vshrl.u32 %v614, 7
    %v616 = vsub.s32 0, %v615
    %v617 = vrot.slane %v612, %v616
    %v618 = vlaneseq
    %v619 = vshrl.u32 %v618, 7
    %v620 = vsub.s32 0, %v619
    %v621 = vrot.slane %v613, %v620
    %v622 = vsub.f32 %v497, %v617
    %v623 = vsub.f32 %v502, %v617
    %v624 = vsub.f32 %v507, %v621
    %v625 = vsub.f32 %v512, %v621
    %v626 = vmul.f32 %v622, 1.442695
    %v627 = vpow.pop %v626
    %v628 = vmul.f32 %v623, 1.442695
    %v629 = vpow.pop %v628
    %v630 = vmul.f32 %v624, 1.442695
    %v631 = vpow.pop %v630
    %v632 = vmul.f32 %v625, 1.442695
    %v633 = vpow.pop %v632
    %v636 = vrot.slane %v613, 7
    %v637 = vsel %vm198, %v636, %v612
    %v639 = vsub.f32 %v586, %v637
    %v640 = vmul.f32 %v639, 1.442695
    %v641 = vpow.pop %v640
    %v642 = vsel %vm589, %v627, 0.0
    %v643 = vsel %vm589, %v629, 0.0
    %v644 = vadd.f32 %v642, %v643
    %v645 = vrot.slane %v644, 4
    %v646 = vadd.f32 %v644, %v645
    %v647 = vrot.slane %v646, 2
    %v648 = vadd.f32 %v646, %v647
    %v649 = vrot.slane %v648, 1
    %v650 = vadd.f32 %v648, %v649
    %v651 = vsel %vm589, %v631, 0.0
    %v652 = vsel %vm589, %v633, 0.0
    %v653 = vadd.f32 %v651, %v652
    %v654 = vrot.slane %v653, 4
    %v655 = vadd.f32 %v653, %v654
    %v656 = vrot.slane %v655, 2
    %v657 = vadd.f32 %v655, %v656
    %v658 = vrot.slane %v657, 1
    %v659 = vadd.f32 %v657, %v658
    %v661 = vrot.slane %v641, 1
    %v664 = vadd.f32 %v650, %v641
    %v665 = vadd.f32 %v659, %v661
    %v667 = vsel %vm589, %v627, 0
    %v670 = vsel %vm589, %v629, 0
    %v673 = vsel %vm589, %v631, 0
    %v676 = vsel %vm589, %v633, 0
    %vm678 = vcmask 1043456
    %v680 = vsel %vm678, %v380, 0
    %682 = vmatprep.subr.mxu0 0.0
    %683 = vmatpush1.msra.mxu0 0.0
    %684 = vmatprep.subr.mxu0 0.0
    %685 = vmatpush1.msra.mxu0 0.0
    %686 = vmatprep.subr.mxu0 0.0
    %687 = vmatpush1.msra.mxu0 0.0
    %688 = vmatprep.subr.mxu0 0.0
    %689 = vmatpush1.msra.mxu0 0.0
    %690 = vmatprep.subr.mxu0 0.0
    %691 = vmatpush1.msra.mxu0 0.0
    %692 = vmatprep.subr.mxu0 0.0
    %693 = vmatpush1.msra.mxu0 0.0
    %694 = vmatprep.subr.mxu0 0.0
    %695 = vmatpush1.msra.mxu0 0.0
    %696 = vmatprep.subr.mxu0 0.0
    %697 = vmatpush1.msra.mxu0 0.0
    %698 = vmatprep.subr.mxu0 0.0
    %699 = vmatpush1.msra.mxu0 0.0
    %700 = vmatprep.subr.mxu0 0.0
    %701 = vmatpush1.msra.mxu0 0.0
    %702 = vmatprep.subr.mxu0 0.0
    %703 = vmatpush1.msra.mxu0 0.0
    %704 = vmatprep.subr.mxu0 0.0
    %705 = vmatpush1.msra.mxu0 0.0
    %706 = vmatprep.subr.mxu0 0.0
    %707 = vmatpush1.msra.mxu0 0.0
    %708 = vmatprep.subr.mxu0 0.0
    %709 = vmatpush1.msra.mxu0 0.0
    %710 = vmatprep.subr.mxu0 0.0
    %711 = vmatpush1.msra.mxu0 0.0
    %712 = vmatprep.subr.mxu0 0.0
    %713 = vmatpush1.msra.mxu0 %v680
    %714 = vmatprep.subr.mxu0 0.0
    %715 = vmatpush2.msra.mxu0 0.0
    %716 = vmatprep.subr.mxu0 0.0
    %717 = vmatpush2.msra.mxu0 0.0
    %718 = vmatprep.subr.mxu0 0.0
    %719 = vmatpush2.msra.mxu0 0.0
    %720 = vmatprep.subr.mxu0 0.0
    %721 = vmatpush2.msra.mxu0 0.0
    %722 = vmatprep.subr.mxu0 0.0
    %723 = vmatpush2.msra.mxu0 0.0
    %724 = vmatprep.subr.mxu0 0.0
    %725 = vmatpush2.msra.mxu0 0.0
    %726 = vmatprep.subr.mxu0 0.0
    %727 = vmatpush2.msra.mxu0 0.0
    %728 = vmatprep.subr.mxu0 0.0
    %729 = vmatpush2.msra.mxu0 0.0
    %730 = vmatprep.subr.mxu0 0.0
    %731 = vmatpush2.msra.mxu0 0.0
    %732 = vmatprep.subr.mxu0 0.0
    %733 = vmatpush2.msra.mxu0 0.0
    %734 = vmatprep.subr.mxu0 0.0
    %735 = vmatpush2.msra.mxu0 0.0
    %736 = vmatprep.subr.mxu0 0.0
    %737 = vmatpush2.msra.mxu0 0.0
    %738 = vmatprep.subr.mxu0 0.0
    %739 = vmatpush2.msra.mxu0 0.0
    %740 = vmatprep.subr.mxu0 0.0
    %741 = vmatpush2.msra.mxu0 0.0
    %742 = vmatprep.subr.mxu0 0.0
    %743 = vmatpush2.msra.mxu0 0.0
    %744 = vmatprep.subr.mxu0 0.0
    %745 = vmatpush2.msra.mxu0 0.0
    %746 = vmatprep.mubr.f32.mxu0 0.0
    %747 = vmatmul.mubr.f32.gmra.mxu0 %v667
    %v748 = vpop.f32.mrf.mxu0
    %v749 = vadd.f32 0.0, %v748
    %v750 = vpop.f32.mrf.mxu0
    %751 = vmatprep.mubr.f32.mxu0 0.0
    %752 = vmatmul.mubr.f32.gmra.mxu0 %v670
    %v753 = vpop.f32.mrf.mxu0
    %v754 = vadd.f32 0.0, %v753
    %v755 = vpop.f32.mrf.mxu0
    %756 = vmatprep.mubr.f32.mxu0 0.0
    %757 = vmatmul.mubr.f32.gmra.mxu0 %v673
    %v758 = vpop.f32.mrf.mxu0
    %v759 = vadd.f32 0.0, %v758
    %v760 = vpop.f32.mrf.mxu0
    %761 = vmatprep.mubr.f32.mxu0 0.0
    %762 = vmatmul.mubr.f32.gmra.mxu0 %v676
    %v763 = vpop.f32.mrf.mxu0
    %v764 = vadd.f32 0.0, %v763
    %v765 = vpop.f32.mrf.mxu0
    %766 = vdwg.mxu0
    %v767 = vsel %vm589, %v641, 0
    %769 = vmatprep.subr.mxu0 0.0
    %770 = vmatpush1.msra.mxu0 0.0
    %771 = vmatprep.subr.mxu0 0.0
    %772 = vmatpush1.msra.mxu0 0.0
    %773 = vmatprep.subr.mxu0 0.0
    %774 = vmatpush1.msra.mxu0 0.0
    %775 = vmatprep.subr.mxu0 0.0
    %776 = vmatpush1.msra.mxu0 0.0
    %777 = vmatprep.subr.mxu0 0.0
    %778 = vmatpush1.msra.mxu0 0.0
    %779 = vmatprep.subr.mxu0 0.0
    %780 = vmatpush1.msra.mxu0 0.0
    %781 = vmatprep.subr.mxu0 0.0
    %782 = vmatpush1.msra.mxu0 0.0
    %783 = vmatprep.subr.mxu0 0.0
    %784 = vmatpush1.msra.mxu0 0.0
    %785 = vmatprep.subr.mxu0 0.0
    %786 = vmatpush1.msra.mxu0 0.0
    %787 = vmatprep.subr.mxu0 0.0
    %788 = vmatpush1.msra.mxu0 0.0
    %789 = vmatprep.subr.mxu0 0.0
    %790 = vmatpush1.msra.mxu0 0.0
    %791 = vmatprep.subr.mxu0 0.0
    %792 = vmatpush1.msra.mxu0 0.0
    %793 = vmatprep.subr.mxu0 0.0
    %794 = vmatpush1.msra.mxu0 0.0
    %795 = vmatprep.subr.mxu0 0.0
    %796 = vmatpush1.msra.mxu0 0.0
    %797 = vmatprep.subr.mxu0 0.0
    %798 = vmatpush1.msra.mxu0 0.0
    %799 = vmatprep.subr.mxu0 0.0
    %800 = vmatpush1.msra.mxu0 %v680
    %801 = vmatprep.subr.mxu0 0.0
    %802 = vmatpush2.msra.mxu0 0.0
    %803 = vmatprep.subr.mxu0 0.0
    %804 = vmatpush2.msra.mxu0 0.0
    %805 = vmatprep.subr.mxu0 0.0
    %806 = vmatpush2.msra.mxu0 0.0
    %807 = vmatprep.subr.mxu0 0.0
    %808 = vmatpush2.msra.mxu0 0.0
    %809 = vmatprep.subr.mxu0 0.0
    %810 = vmatpush2.msra.mxu0 0.0
    %811 = vmatprep.subr.mxu0 0.0
    %812 = vmatpush2.msra.mxu0 0.0
    %813 = vmatprep.subr.mxu0 0.0
    %814 = vmatpush2.msra.mxu0 0.0
    %815 = vmatprep.subr.mxu0 0.0
    %816 = vmatpush2.msra.mxu0 0.0
    %817 = vmatprep.subr.mxu0 0.0
    %818 = vmatpush2.msra.mxu0 0.0
    %819 = vmatprep.subr.mxu0 0.0
    %820 = vmatpush2.msra.mxu0 0.0
    %821 = vmatprep.subr.mxu0 0.0
    %822 = vmatpush2.msra.mxu0 0.0
    %823 = vmatprep.subr.mxu0 0.0
    %824 = vmatpush2.msra.mxu0 0.0
    %825 = vmatprep.subr.mxu0 0.0
    %826 = vmatpush2.msra.mxu0 0.0
    %827 = vmatprep.subr.mxu0 0.0
    %828 = vmatpush2.msra.mxu0 0.0
    %829 = vmatprep.subr.mxu0 0.0
    %830 = vmatpush2.msra.mxu0 0.0
    %831 = vmatprep.subr.mxu0 0.0
    %832 = vmatpush2.msra.mxu0 0.0
    %833 = vmatprep.mubr.f32.mxu0 0.0
    %834 = vmatmul.mubr.f32.gmra.mxu0 %v767
    %v835 = vpop.f32.mrf.mxu0
    %v836 = vadd.f32 0.0, %v835
    %v837 = vpop.f32.mrf.mxu0
    %838 = vdwg.mxu0
    %843 = vrot.lane.b32.xlu0 %v322, 96
    %v844 = vpop.permute.xlu0 %843
    %845 = vrot.lane.b32.xlu0 %v325, 96
    %v846 = vpop.permute.xlu0 %845
    %847 = vrot.lane.b32.xlu0 %v330, 96
    %v848 = vpop.permute.xlu0 %847
    %849 = vrot.lane.b32.xlu0 %v333, 96
    %v850 = vpop.permute.xlu0 %849
    %v855 = vmul.f32 %v749, %v844
    %v856 = vmul.f32 %v754, %v846
    %v857 = vmul.f32 %v759, %v848
    %v858 = vmul.f32 %v764, %v850
    %v859 = vsel %vm143, %v855, 0.0
    %v860 = vsel %vm143, %v856, 0.0
    %v861 = vadd.f32 %v859, %v860
    %v862 = vrot.slane %v861, 4
    %v863 = vadd.f32 %v861, %v862
    %v864 = vrot.slane %v863, 2
    %v865 = vadd.f32 %v863, %v864
    %v866 = vrot.slane %v865, 1
    %v867 = vadd.f32 %v865, %v866
    %v868 = vsel %vm143, %v857, 0.0
    %v869 = vsel %vm143, %v858, 0.0
    %v870 = vadd.f32 %v868, %v869
    %v871 = vrot.slane %v870, 4
    %v872 = vadd.f32 %v870, %v871
    %v873 = vrot.slane %v872, 2
    %v874 = vadd.f32 %v872, %v873
    %v875 = vrot.slane %v874, 1
    %v876 = vadd.f32 %v874, %v875
    %878 = vrot.lane.b32.xlu0 %v371, 96
    %v879 = vpop.permute.xlu0 %878
    %v881 = vmul.f32 %v836, %v879
    %v883 = vrot.slane %v881, 1
    %v886 = vadd.f32 %v867, %v881
    %v887 = vadd.f32 %v876, %v883
    %v890 = vrot.slane %v665, 7
    %v891 = vsel %vm198, %v890, %v664
    %v892 = vsel %vm589, %v891, 0
    %894 = vmatprep.subr.mxu0 0.0
    %895 = vmatpush1.msra.mxu0 0.0
    %896 = vmatprep.subr.mxu0 0.0
    %897 = vmatpush1.msra.mxu0 0.0
    %898 = vmatprep.subr.mxu0 0.0
    %899 = vmatpush1.msra.mxu0 0.0
    %900 = vmatprep.subr.mxu0 0.0
    %901 = vmatpush1.msra.mxu0 0.0
    %902 = vmatprep.subr.mxu0 0.0
    %903 = vmatpush1.msra.mxu0 0.0
    %904 = vmatprep.subr.mxu0 0.0
    %905 = vmatpush1.msra.mxu0 0.0
    %906 = vmatprep.subr.mxu0 0.0
    %907 = vmatpush1.msra.mxu0 0.0
    %908 = vmatprep.subr.mxu0 0.0
    %909 = vmatpush1.msra.mxu0 0.0
    %910 = vmatprep.subr.mxu0 0.0
    %911 = vmatpush1.msra.mxu0 0.0
    %912 = vmatprep.subr.mxu0 0.0
    %913 = vmatpush1.msra.mxu0 0.0
    %914 = vmatprep.subr.mxu0 0.0
    %915 = vmatpush1.msra.mxu0 0.0
    %916 = vmatprep.subr.mxu0 0.0
    %917 = vmatpush1.msra.mxu0 0.0
    %918 = vmatprep.subr.mxu0 0.0
    %919 = vmatpush1.msra.mxu0 0.0
    %920 = vmatprep.subr.mxu0 0.0
    %921 = vmatpush1.msra.mxu0 0.0
    %922 = vmatprep.subr.mxu0 0.0
    %923 = vmatpush1.msra.mxu0 0.0
    %924 = vmatprep.subr.mxu0 0.0
    %925 = vmatpush1.msra.mxu0 %v680
    %926 = vmatprep.subr.mxu0 0.0
    %927 = vmatpush2.msra.mxu0 0.0
    %928 = vmatprep.subr.mxu0 0.0
    %929 = vmatpush2.msra.mxu0 0.0
    %930 = vmatprep.subr.mxu0 0.0
    %931 = vmatpush2.msra.mxu0 0.0
    %932 = vmatprep.subr.mxu0 0.0
    %933 = vmatpush2.msra.mxu0 0.0
    %934 = vmatprep.subr.mxu0 0.0
    %935 = vmatpush2.msra.mxu0 0.0
    %936 = vmatprep.subr.mxu0 0.0
    %937 = vmatpush2.msra.mxu0 0.0
    %938 = vmatprep.subr.mxu0 0.0
    %939 = vmatpush2.msra.mxu0 0.0
    %940 = vmatprep.subr.mxu0 0.0
    %941 = vmatpush2.msra.mxu0 0.0
    %942 = vmatprep.subr.mxu0 0.0
    %943 = vmatpush2.msra.mxu0 0.0
    %944 = vmatprep.subr.mxu0 0.0
    %945 = vmatpush2.msra.mxu0 0.0
    %946 = vmatprep.subr.mxu0 0.0
    %947 = vmatpush2.msra.mxu0 0.0
    %948 = vmatprep.subr.mxu0 0.0
    %949 = vmatpush2.msra.mxu0 0.0
    %950 = vmatprep.subr.mxu0 0.0
    %951 = vmatpush2.msra.mxu0 0.0
    %952 = vmatprep.subr.mxu0 0.0
    %953 = vmatpush2.msra.mxu0 0.0
    %954 = vmatprep.subr.mxu0 0.0
    %955 = vmatpush2.msra.mxu0 0.0
    %956 = vmatprep.subr.mxu0 0.0
    %957 = vmatpush2.msra.mxu0 0.0
    %958 = vmatprep.mubr.f32.mxu0 0.0
    %959 = vmatmul.mubr.f32.gmra.mxu0 %v892
    %v960 = vpop.f32.mrf.mxu0
    %v961 = vadd.f32 0.0, %v960
    %v962 = vpop.f32.mrf.mxu0
    %963 = vdwg.mxu0
    %v964 = vrcp.pop %v961
    %v966 = vrot.slane %v964, 1
    %v969 = vmul.f32 %v886, %v964
    %v970 = vmul.f32 %v887, %v966
    %v971 = vpack.c.bf16 %v969, %v969
    %v972 = vpack.c.bf16 %v970, %v970
    %v973 = vld [vmem:[%s7] sm:$0xf]
    %v974 = vld [vmem:[%s7 + $0x4] sm:$0xf]
    %v975 = vld [vmem:[%s7 + $0x8] sm:$0xf]
    %v976 = vld [vmem:[%s7 + $0xc] sm:$0xf]
    %v977 = vld [vmem:[#allocation13] sm:$0x1]
    %v979 = vlaneseq
    %v980 = vshrl.u32 %v979, 7
    %v981 = vsub.s32 0, %v980
    %v982 = vrot.slane %v977, %v981
    %v986 = vunpack.c.l.b16 %v971
    %v987 = vunpack.c.l.b16 %v972
    %v988 = vrot.slane %v987, 7
    %v989 = vsel %vm198, %v988, %v986
    %v990 = vpack.c.b16 %v989, %v989
    %v995 = vunpack.c.l.b16 %v973
    %v996 = vunpack.c.l.b16 %v974
    %v997 = vunpack.c.l.b16 %v975
    %v998 = vunpack.c.l.b16 %v976
    %v999 = vpack.c.b16 %v996, %v995
    %v1000 = vpack.c.b16 %v998, %v997
    %v1004 = vsel %vm143, %v990, 0
    %1006 = vmatprep.subr.bf16.mxu0 0
    %1007 = vmatpush1.bf16.msra.mxu0 0
    %1008 = vmatprep.subr.bf16.mxu0 0
    %1009 = vmatpush1.bf16.msra.mxu0 0
    %1010 = vmatprep.subr.bf16.mxu0 0
    %1011 = vmatpush1.bf16.msra.mxu0 0
    %1012 = vmatprep.subr.bf16.mxu0 0
    %1013 = vmatpush1.bf16.msra.mxu0 0
    %1014 = vmatprep.subr.bf16.mxu0 0
    %1015 = vmatpush1.bf16.msra.mxu0 0
    %1016 = vmatprep.subr.bf16.mxu0 0
    %1017 = vmatpush1.bf16.msra.mxu0 0
    %1018 = vmatprep.subr.bf16.mxu0 0
    %1019 = vmatpush1.bf16.msra.mxu0 %v1000
    %1020 = vmatprep.subr.bf16.mxu0 0
    %1021 = vmatpush1.bf16.msra.mxu0 %v999
    %1022 = vmatprep.subr.bf16.mxu0 0
    %1023 = vmatpush2.bf16.msra.mxu0 0
    %1024 = vmatprep.subr.bf16.mxu0 0
    %1025 = vmatpush2.bf16.msra.mxu0 0
    %1026 = vmatprep.subr.bf16.mxu0 0
    %1027 = vmatpush2.bf16.msra.mxu0 0
    %1028 = vmatprep.subr.bf16.mxu0 0
    %1029 = vmatpush2.bf16.msra.mxu0 0
    %1030 = vmatprep.subr.bf16.mxu0 0
    %1031 = vmatpush2.bf16.msra.mxu0 0
    %1032 = vmatprep.subr.bf16.mxu0 0
    %1033 = vmatpush2.bf16.msra.mxu0 0
    %1034 = vmatprep.subr.bf16.mxu0 0
    %1035 = vmatpush2.bf16.msra.mxu0 0
    %1036 = vmatprep.subr.bf16.mxu0 0
    %1037 = vmatpush2.bf16.msra.mxu0 0
    %1038 = vmatprep.mubr.bf16.mxu0 0
    %1039 = vmatmul.mubr.bf16.gmra.mxu0 %v1004
    %v1040 = vpop.f32.mrf.mxu0
    %v1041 = vadd.f32 %v982, %v1040
    %v1042 = vpop.f32.mrf.mxu0
    %v1043 = vpop.f32.mrf.mxu0
    %v1044 = vpop.f32.mrf.mxu0
    %1045 = vdwg.mxu0
    %vm1046 = vcmask 517120
    %1047 = vst.msk [vmem:[#allocation16] sm:$0x3] %vm1046, %v1041
    // Predicated region
    $region78: #{tpu_custom_call.1} parent=1 // pred_check
      _
    $region79: #{tpu_custom_call.1} parent=1 // pred_check_branch
      %1049 = sbr.rel (0) target = $region81
    $region80: #{tpu_custom_call.1} parent=1 // pred_region
      %s1051 = ssub.s32 32, 32
      %1052 = vsyncadd [#allocation4], %s1051
      %s1054 = sshll.u32 [#allocation16], 4
      %s1055 = int_to_ptr.vmem [resolvable:$true] %s1054
      %1057 = dma.vmem_to_hbm [thread:$0]  %s1055, 32, %s11, [#allocation4]
    $region81: #{tpu_custom_call.1} parent=1 // pred_fallthru
      _
    // Predicated region
    $region82: #{tpu_custom_call.1} parent=1 // pred_check
      _
    $region83: #{tpu_custom_call.1} parent=1 // pred_check_branch
      %1059 = sbr.rel (0) target = $region85
    $region84: #{tpu_custom_call.1} parent=1 // pred_region
      %1060 = dma.done [#allocation4], 32
    $region85: #{tpu_custom_call.1} parent=1 // pred_fallthru
      _
    %1061 = vsyncpa [#allocation3], 1
    %1062 = vsyncpa [#allocation6], 1
    %1063 = vsyncpa [#allocation9], 1
    %1064 = vsyncpa [#allocation12], 1
    %1065 = vsyncpa [#allocation15], 1
    %1066 = vsyncpa [#allocation4], 1

</llo_original>
